<compile_context>
chip_gen: v5e
topology: v5e:2x2
jax: 0.10.0
libtpu: 0.0.40
codegen_flags: <defaults>
</compile_context>

<pallas_src>
import functools

import jax
import jax.numpy as jnp
from jax import lax
from jax.experimental import pallas as pl
from jax.experimental.pallas import tpu as pltpu


def _focal_loss_kernel(logits_ref, targets_ref, out_ref, *, alpha, gamma,
                       s_total, tile_n):
    """Per-tile focal loss, accumulated lane-dense into a per-batch partial.

    logits_ref : (1, C, TN) float — one batch, all classes, TN spatial lanes
    targets_ref: (1, 1, TN) int32 — target class per pixel
    out_ref    : (1, 1, TN) f32   — per-batch partial sums, resident across the
                                    inner (spatial) grid axis
    """
    i = pl.program_id(1)

    @pl.when(i == 0)
    def _():
        out_ref[...] = jnp.zeros_like(out_ref)

    x = logits_ref[0].astype(jnp.float32)            # (C, TN), classes on sublanes
    t = targets_ref[0]                               # (1, TN) int32

    # One-hot gather of the target-class logit (class dim = sublanes).
    cls = lax.broadcasted_iota(jnp.int32, x.shape, 0)          # (C, TN)
    t_logit = jnp.sum(jnp.where(cls == t, x, 0.0),
                      axis=0, keepdims=True)                    # (1, TN)

    # Cross-entropy with reduction='none': logsumexp_over_classes - x[target]
    m = jnp.max(x, axis=0, keepdims=True)
    lse = m + jnp.log(jnp.sum(jnp.exp(x - m), axis=0, keepdims=True))
    ce = lse - t_logit                                          # (1, TN)

    # Focal modulation uses the RAW logit (matches the PyTorch module exactly;
    # note this is not the standard softmax-probability p_t).
    d = 1.0 - t_logit
    if float(gamma).is_integer():
        focal = d ** int(gamma)          # safe for negative base
    else:
        focal = jnp.power(d, gamma)      # matches torch.pow NaN behavior
    fl = jnp.float32(alpha) * focal * ce                        # (1, TN)

    # Mask lanes beyond the true spatial extent (padded edge block).
    lane = lax.broadcasted_iota(jnp.int32, fl.shape, 1) + i * tile_n
    fl = jnp.where(lane < s_total, fl, 0.0)

    # Lane-dense VPU accumulate into the resident per-batch output block.
    out_ref[...] += fl[None]                                    # (1, 1, TN)


def _pick_tile_n(s, c, itemsize, *, vmem_budget=8 << 20, cap=8192):
    """Largest lane tile (multiple of 128) whose double-buffered inputs fit the budget."""
    s_pad = ((s + 127) // 128) * 128
    per_lane = 2 * (c * itemsize + 4) + 4   # 2x(logits + targets) + resident out
    tile = vmem_budget // per_lane
    tile = int(max(128, min(tile, cap, s_pad)))
    return max(128, (tile // 128) * 128)


def focal_loss(logits, targets, *, alpha=1.0, gamma=2.0, reduction="mean"):
    """logits: [B, C, H, W] float; targets: [B, H, W] int. Returns scalar."""
    B, C, H, W = logits.shape
    S = H * W
    N = B * S

    # Free reshapes of the native NCHW layout — no HBM transpose pass.
    x = logits.reshape(B, C, S)
    t = targets.reshape(B, 1, S).astype(jnp.int32)

    tile_n = _pick_tile_n(S, C, jnp.dtype(x.dtype).itemsize)
    grid = (B, pl.cdiv(S, tile_n))

    itemsize = jnp.dtype(x.dtype).itemsize
    cost = pl.CostEstimate(
        flops=int(N * (6 * C + 12)),
        transcendentals=int(N * (C + 1)),
        bytes_accessed=int(N * C * itemsize + N * 4 + B * tile_n * 4),
    )

    partials = pl.pallas_call(
        functools.partial(_focal_loss_kernel, alpha=float(alpha),
                          gamma=float(gamma), s_total=S, tile_n=tile_n),
        out_shape=jax.ShapeDtypeStruct((B, 1, tile_n), jnp.float32),
        grid_spec=pltpu.PrefetchScalarGridSpec(
            num_scalar_prefetch=0,
            grid=grid,
            in_specs=[
                pl.BlockSpec((1, C, tile_n), lambda b, i: (b, 0, i)),   # logits
                pl.BlockSpec((1, 1, tile_n), lambda b, i: (b, 0, i)),   # targets
            ],
            out_specs=pl.BlockSpec((1, 1, tile_n), lambda b, i: (b, 0, 0)),
        ),
        compiler_params=pltpu.CompilerParams(
            dimension_semantics=("parallel", "arbitrary"),
            vmem_limit_bytes=32 * 1024 * 1024,
        ),
        cost_estimate=cost,
    )(x, t)

    total = jnp.sum(partials)

    if reduction == "mean":
        return total / jnp.float32(N)
    elif reduction == "sum":
        return total
    else:
        # TODO(synk): reduction='none' needs a per-pixel [B,H,W] output spec.
        raise NotImplementedError("reduction='none' not implemented")


def _focal_loss_ref(logits, targets, alpha=1.0, gamma=2.0):
    """Pure-JAX reference mirroring the PyTorch module (reduction='mean')."""
    C = logits.shape[1]
    lg = logits.astype(jnp.float32)
    logp = jax.nn.log_softmax(lg, axis=1)                          # [B,C,H,W]
    onehot = jax.nn.one_hot(targets, C, axis=1, dtype=jnp.float32)
    ce = -jnp.sum(logp * onehot, axis=1)                           # [B,H,W]
    p_t = jnp.sum(lg * onehot, axis=1)                             # raw logit gather
    d = 1.0 - p_t
    focal = d ** int(gamma) if float(gamma).is_integer() else jnp.power(d, gamma)
    return jnp.mean(alpha * focal * ce)


if __name__ == "__main__":
    key = jax.random.PRNGKey(0)
    k_logits, k_targets = jax.random.split(key)

    B, C, H, W = 2, 4, 16, 16
    logits = jax.random.normal(k_logits, (B, C, H, W), dtype=jnp.float32)
    targets = jax.random.randint(k_targets, (B, H, W), 0, C, dtype=jnp.int32)

    out = focal_loss(logits, targets, alpha=1.0, gamma=2.0, reduction="mean")
    out = jax.block_until_ready(out)

    ref = _focal_loss_ref(logits, targets, alpha=1.0, gamma=2.0)
    assert jnp.allclose(out, ref, rtol=1e-5, atol=1e-5), (out, ref)

    print("KERNEL_OK")
</pallas_src>

<mosaic_0001>
module attributes {stable_mosaic.version = 11 : i64} {
  func.func @_focal_loss_kernel(%arg0: i32, %arg1: i32, %arg2: memref<1x4x256xf32, #tpu.memory_space<vmem>>, %arg3: memref<1x1x256xi32, #tpu.memory_space<vmem>>, %arg4: memref<1x1x256xf32, #tpu.memory_space<vmem>>) attributes {dimension_semantics = [#tpu.dimension_semantics<parallel>, #tpu.dimension_semantics<arbitrary>], iteration_bounds = array<i64: 2, 1>, scalar_prefetch = 0 : i64, scratch_operands = 0 : i64, tpu.core_type = #tpu.core_type<tc>, window_params = [{transform_indices = @transform_0, window_bounds = array<i64: 1, 4, 256>}, {transform_indices = @transform_1, window_bounds = array<i64: 1, 1, 256>}, {transform_indices = @transform_2, window_bounds = array<i64: 1, 1, 256>}]} {
    %c0_i32 = arith.constant 0 : i32
    %0 = arith.cmpi eq, %arg1, %c0_i32 : i32
    %1 = arith.extui %0 : i1 to i32
    %c0_i32_0 = arith.constant 0 : i32
    %2 = arith.cmpi ne, %1, %c0_i32_0 : i32
    scf.if %2 {
      %cst_19 = arith.constant 0.000000e+00 : f32
      %42 = vector.broadcast %cst_19 : f32 to vector<1x1x256xf32>
      %c0_20 = arith.constant 0 : index
      %c0_21 = arith.constant 0 : index
      %c0_22 = arith.constant 0 : index
      %43 = vector.load %arg4[%c0_20, %c0_21, %c0_22] : memref<1x1x256xf32, #tpu.memory_space<vmem>>, vector<1x1x256xf32>
      tpu.vector_store %arg4[%c0_20, %c0_21, %c0_22], %42 {strides = array<i32>} : memref<1x1x256xf32, #tpu.memory_space<vmem>>, vector<1x1x256xf32>,
    } else {
    }
    %c0 = arith.constant 0 : index
    %c0_1 = arith.constant 0 : index
    %c0_2 = arith.constant 0 : index
    %3 = vector.load %arg2[%c0, %c0_1, %c0_2] : memref<1x4x256xf32, #tpu.memory_space<vmem>>, vector<1x4x256xf32>
    %4 = vector.shape_cast %3 : vector<1x4x256xf32> to vector<4x256xf32>
    %c0_3 = arith.constant 0 : index
    %c0_4 = arith.constant 0 : index
    %c0_5 = arith.constant 0 : index
    %5 = vector.load %arg3[%c0_3, %c0_4, %c0_5] : memref<1x1x256xi32, #tpu.memory_space<vmem>>, vector<1x1x256xi32>
    %6 = vector.shape_cast %5 : vector<1x1x256xi32> to vector<1x256xi32>
    %7 = tpu.iota {dimensions = array<i32: 0>} : vector<4x256xi32>
    %8 = vector.broadcast %6 : vector<1x256xi32> to vector<4x256xi32>
    %9 = arith.cmpi eq, %7, %8 : vector<4x256xi32>
    %cst = arith.constant 0.000000e+00 : f32
    %10 = vector.broadcast %cst : f32 to vector<4x256xf32>
    %11 = arith.select %9, %4, %10 : vector<4x256xi1>, vector<4x256xf32>
    %cst_6 = arith.constant dense<0.000000e+00> : vector<256xf32>
    %12 = vector.multi_reduction <add>, %11, %cst_6 [0] : vector<4x256xf32> to vector<256xf32>
    %13 = vector.shape_cast %12 : vector<256xf32> to vector<1x256xf32>
    %cst_7 = arith.constant dense<0xFF800000> : vector<256xf32>
    %14 = vector.multi_reduction <maximumf>, %4, %cst_7 [0] : vector<4x256xf32> to vector<256xf32>
    %15 = vector.shape_cast %14 : vector<256xf32> to vector<1x256xf32>
    %16 = vector.broadcast %15 : vector<1x256xf32> to vector<4x256xf32>
    %17 = arith.subf %4, %16 : vector<4x256xf32>
    %18 = math.exp %17 : vector<4x256xf32>
    %cst_8 = arith.constant dense<0.000000e+00> : vector<256xf32>
    %19 = vector.multi_reduction <add>, %18, %cst_8 [0] : vector<4x256xf32> to vector<256xf32>
    %20 = vector.shape_cast %19 : vector<256xf32> to vector<1x256xf32>
    %21 = math.log %20 : vector<1x256xf32>
    %22 = arith.addf %15, %21 : vector<1x256xf32>
    %23 = arith.subf %22, %13 : vector<1x256xf32>
    %cst_9 = arith.constant 1.000000e+00 : f32
    %24 = vector.broadcast %cst_9 : f32 to vector<1x256xf32>
    %25 = arith.subf %24, %13 : vector<1x256xf32>
    %26 = arith.mulf %25, %25 : vector<1x256xf32>
    %cst_10 = arith.constant 1.000000e+00 : f32
    %27 = vector.broadcast %cst_10 : f32 to vector<1x256xf32>
    %28 = arith.mulf %27, %26 : vector<1x256xf32>
    %29 = arith.mulf %28, %23 : vector<1x256xf32>
    %30 = tpu.iota {dimensions = array<i32: 1>} : vector<1x256xi32>
    %c256_i32 = arith.constant 256 : i32
    %31 = arith.muli %arg1, %c256_i32 : i32
    %32 = vector.broadcast %31 : i32 to vector<1x256xi32>
    %33 = arith.addi %30, %32 : vector<1x256xi32>
    %c256_i32_11 = arith.constant 256 : i32
    %34 = vector.broadcast %c256_i32_11 : i32 to vector<1x256xi32>
    %35 = arith.cmpi slt, %33, %34 : vector<1x256xi32>
    %cst_12 = arith.constant 0.000000e+00 : f32
    %36 = vector.broadcast %cst_12 : f32 to vector<1x256xf32>
    %37 = arith.select %35, %29, %36 : vector<1x256xi1>, vector<1x256xf32>
    %c0_13 = arith.constant 0 : index
    %c0_14 = arith.constant 0 : index
    %c0_15 = arith.constant 0 : index
    %38 = vector.load %arg4[%c0_13, %c0_14, %c0_15] : memref<1x1x256xf32, #tpu.memory_space<vmem>>, vector<1x1x256xf32>
    %39 = vector.shape_cast %37 : vector<1x256xf32> to vector<1x1x256xf32>
    %40 = arith.addf %38, %39 : vector<1x1x256xf32>
    %c0_16 = arith.constant 0 : index
    %c0_17 = arith.constant 0 : index
    %c0_18 = arith.constant 0 : index
    %41 = vector.load %arg4[%c0_16, %c0_17, %c0_18] : memref<1x1x256xf32, #tpu.memory_space<vmem>>, vector<1x1x256xf32>
    tpu.vector_store %arg4[%c0_16, %c0_17, %c0_18], %40 {strides = array<i32>} : memref<1x1x256xf32, #tpu.memory_space<vmem>>, vector<1x1x256xf32>,
    return
  }
  func.func @transform_0(%arg0: i32, %arg1: i32) -> (i32, i32, i32) {
    %c0_i32 = arith.constant 0 : i32
    %c0_i32_0 = arith.constant 0 : i32
    return %arg0, %c0_i32, %arg1 : i32, i32, i32
  }
  func.func @transform_1(%arg0: i32, %arg1: i32) -> (i32, i32, i32) {
    %c0_i32 = arith.constant 0 : i32
    %c0_i32_0 = arith.constant 0 : i32
    return %arg0, %c0_i32, %arg1 : i32, i32, i32
  }
  func.func @transform_2(%arg0: i32, %arg1: i32) -> (i32, i32, i32) {
    %c0_i32 = arith.constant 0 : i32
    %c0_i32_0 = arith.constant 0 : i32
    %c0_i32_1 = arith.constant 0 : i32
    return %arg0, %c0_i32, %c0_i32_0 : i32, i32, i32
  }
}

</mosaic_0001>

<llo_original>
// kernel: tpu_custom_call.1
$region0: #{tpu_custom_call.1}
  #allocation0 [shape = 'u32[]', space=smem, size = 0x4, offset = 0x4, fixed_abs, tag = 'smem constant byte address 0x4 - core index']
  #allocation1 [shape = 'u32[72,128]{1,0:T(1,128)}', space=vmem, size = 0x9000, scoped, tag = 'internal scratch']
  %s0 = inlined_call_operand.hbm [shape: f32[2,4,256], index: 0, kind: input, shape index: {}]
  %s1 = inlined_call_operand.hbm [shape: s32[2,1,256], index: 1, kind: input, shape index: {}]
  %s2 = inlined_call_operand.hbm [shape: f32[2,1,256], index: 2, kind: output, shape index: {}]
  %s3 = sld [smem:[#allocation0]]
  $region53: #{tpu_custom_call.1} parent=0
    _
  %s5 = ssub.s32 1, %s3
  %s6 = scalar_select 0, %s5, %s3
  $region1: #{tpu_custom_call.1} parent=0
    #allocation2 [shape = 'u8[8192]{0}', space=vmem, size = 0x2000, scoped, tag = 'input window, operand 0']
    #allocation3 [shape = 's32[2]{0}', space=sflag, size = 0x8, scoped, tag = 'scoped memory for tpu_custom_call.1']
    #allocation4 [shape = 's32[2]{0}', space=sflag, size = 0x8, scoped, tag = 'scoped memory for tpu_custom_call.1']
    #allocation5 [shape = 'u8[2048]{0}', space=vmem, size = 0x800, scoped, tag = 'input window, operand 1']
    #allocation6 [shape = 's32[2]{0}', space=sflag, size = 0x8, scoped, tag = 'scoped memory for tpu_custom_call.1']
    #allocation7 [shape = 'u8[2048]{0}', space=vmem, size = 0x800, scoped, tag = 'output window, operand 0']
    %7 = vsyncpa [#allocation3], 0
    %s8 = scalar_lea.sflag [#allocation3], 1
    %9 = vsyncpa %s8, 0
    %10 = vsyncpa [#allocation6], 0
    %s11 = scalar_lea.sflag [#allocation6], 1
    %12 = vsyncpa %s11, 0
    %13 = vsyncpa [#allocation4], 0
    %s14 = scalar_lea.sflag [#allocation4], 1
    %15 = vsyncpa %s14, 0
    loop: start=0, step=1, limit=4
    $region2: #{tpu_custom_call.1} parent=1 // loop_pre_header
      _
    $region3: #{tpu_custom_call.1} parent=1 // loop_header
      %s17 = sphi 0, %s21
      %p18 = scmp.ge.s32.totalorder %s17, 4
      %s24 = sphi 0, %s36
      %s25 = sphi 0, %s32
      %s26 = sphi 0, %s24
      %s27 = sphi 0, %s25
      %s28 = sphi 0, %s26
      %s29 = sphi 0, %s27
      %s41 = sphi 0, %s43
      %s44 = sphi 0, %s41
      %s45 = sphi 0, %s44
      %s61 = sphi 0, %s45
      %s69 = sphi 0, %s71
      %s72 = sphi 0, %s69
      %s73 = sphi 0, %s72
      %s89 = sphi 0, %s73
      %s95 = sphi 0, %s97
      %s98 = sphi 0, %s95
      %s99 = sphi 0, %s98
      %s115 = sphi 0, %s99
    $region4: #{tpu_custom_call.1} parent=1 // loop_header_branch
      %20 = sbr.rel (%p18) target = $region8
    $region5: #{tpu_custom_call.1} parent=1 // loop_body
      %s22 = ssub.s32 %s17, 1
      %s23 = ssub.s32 %s17, 2
      %s30 = sadd.s32 1, %s25
      %p31 = scmp.ge.s32.totalorder %s30, 1
      %s32 = scalar_select %p31, 0, %s30
      %s33 = sadd.s32 1, %s24
      %s34 = scalar_select %p31, %s33, %s24
      %p35 = scmp.ge.s32.totalorder %s34, 2
      %s36 = scalar_select %p35, 0, %s34
      %s37 = ssub.s32 %s24, %s36
      %s38 = ssub.s32 %s25, %s32
      %s39 = sor.u32 %s37, %s38
      %p40 = scmp.eq.s32.totalorder %s39, 0
      %s42 = sadd.s32 %s41, 1
      %s43 = scalar_select %p40, %s41, %s42
      %p46 = pneg %p40
      %p47 = scmp.eq.s32.totalorder %s17, 1
      %p48 = por %p46, %p47
      %p49 = scmp.ne.s32.totalorder %s41, %s44
      %p50 = scmp.eq.s32.totalorder %s17, 0
      %p51 = por %p49, %p50
      %p52 = scmp.ne.s32.totalorder %s41, %s44
      %p53 = scmp.eq.s32.totalorder %s22, 1
      %p54 = por %p52, %p53
      %p55 = scmp.ne.s32.totalorder %s44, %s45
      %p56 = scmp.eq.s32.totalorder %s22, 0
      %p57 = por %p55, %p56
      %p58 = scmp.ne.s32.totalorder %s44, %s45
      %p59 = scmp.eq.s32.totalorder %s23, 1
      %p60 = por %p58, %p59
      %p62 = scmp.ne.s32.totalorder %s45, %s61
      %p63 = scmp.eq.s32.totalorder %s23, 0
      %p64 = por %p62, %p63
      %s65 = ssub.s32 %s24, %s36
      %s66 = ssub.s32 %s25, %s32
      %s67 = sor.u32 %s65, %s66
      %p68 = scmp.eq.s32.totalorder %s67, 0
      %s70 = sadd.s32 %s69, 1
      %s71 = scalar_select %p68, %s69, %s70
      %p74 = pneg %p68
      %p75 = scmp.eq.s32.totalorder %s17, 1
      %p76 = por %p74, %p75
      %p77 = scmp.ne.s32.totalorder %s69, %s72
      %p78 = scmp.eq.s32.totalorder %s17, 0
      %p79 = por %p77, %p78
      %p80 = scmp.ne.s32.totalorder %s69, %s72
      %p81 = scmp.eq.s32.totalorder %s22, 1
      %p82 = por %p80, %p81
      %p83 = scmp.ne.s32.totalorder %s72, %s73
      %p84 = scmp.eq.s32.totalorder %s22, 0
      %p85 = por %p83, %p84
      %p86 = scmp.ne.s32.totalorder %s72, %s73
      %p87 = scmp.eq.s32.totalorder %s23, 1
      %p88 = por %p86, %p87
      %p90 = scmp.ne.s32.totalorder %s73, %s89
      %p91 = scmp.eq.s32.totalorder %s23, 0
      %p92 = por %p90, %p91
      %s93 = ssub.s32 %s24, %s36
      %p94 = scmp.eq.s32.totalorder %s93, 0
      %s96 = sadd.s32 %s95, 1
      %s97 = scalar_select %p94, %s95, %s96
      %p100 = pneg %p94
      %p101 = scmp.eq.s32.totalorder %s17, 1
      %p102 = por %p100, %p101
      %p103 = scmp.ne.s32.totalorder %s95, %s98
      %p104 = scmp.eq.s32.totalorder %s17, 0
      %p105 = por %p103, %p104
      %p106 = scmp.ne.s32.totalorder %s95, %s98
      %p107 = scmp.eq.s32.totalorder %s22, 1
      %p108 = por %p106, %p107
      %p109 = scmp.ne.s32.totalorder %s98, %s99
      %p110 = scmp.eq.s32.totalorder %s22, 0
      %p111 = por %p109, %p110
      %p112 = scmp.ne.s32.totalorder %s98, %s99
      %p113 = scmp.eq.s32.totalorder %s23, 1
      %p114 = por %p112, %p113
      %p116 = scmp.ne.s32.totalorder %s99, %s115
      %p117 = scmp.eq.s32.totalorder %s23, 0
      %p118 = por %p116, %p117
      %p119 = scmp.le.s32.totalorder 1, %s17
      %p120 = scmp.lt.s32.totalorder %s17, 3
      %p121 = pnand %p119, %p120
      %p122 = pneg %p121
      // Predicated region
      $region9: #{tpu_custom_call.1} parent=5 // pred_check
        _
      $region10: #{tpu_custom_call.1} parent=5 // pred_check_branch
        %124 = sbr.rel (%p121) target = $region12
      $region11: #{tpu_custom_call.1} parent=5 // pred_region
        %s125 = ssub.s32 %s17, 1
      $region12: #{tpu_custom_call.1} parent=5 // pred_fallthru
        _
      %p126 = scmp.lt.s32.totalorder %s17, 2
      // Predicated region
      $region13: #{tpu_custom_call.1} parent=5 // pred_check
        %p127 = pneg %p126
      $region14: #{tpu_custom_call.1} parent=5 // pred_check_branch
        %129 = sbr.rel (%p127) target = $region16
      $region15: #{tpu_custom_call.1} parent=5 // pred_region
        // Predicated region
        $region17: #{tpu_custom_call.1} parent=15 // pred_check
          %p130 = pneg %p51
        $region18: #{tpu_custom_call.1} parent=15 // pred_check_branch
          %132 = sbr.rel (%p130) target = $region20
        $region19: #{tpu_custom_call.1} parent=15 // pred_region
          %s133 = sand.u32 %s41, 1
          %s134 = scalar_lea.sflag [#allocation3], %s133
          %s135 = sand.u32 %s41, 1
          %s136 = smul.addr %s135, 8
          %s137 = scalar_lea.vmem [#allocation2], %s136
          %s138 = smul.u32 2, %s25
          %140 = vsyncadd %s134, 0
          %s141 = smul.addr %s24, 2
          %s142 = sadd.s32 %s138, %s141
          %s143 = smul.addr %s142, 4
          %s144 = scalar_lea.hbm %s0, %s143
          %s146 = sshll.u32 %s144, 4
          %s147 = int_to_ptr.hbm [resolvable:$true] %s146
          %s148 = sshll.u32 %s137, 4
          %s149 = int_to_ptr.vmem [resolvable:$true] %s148
          %151 = dma.hbm_to_vmem [thread:$0]  %s147, 128, %s149, %s134
        $region20: #{tpu_custom_call.1} parent=15 // pred_fallthru
          _
        // Predicated region
        $region21: #{tpu_custom_call.1} parent=15 // pred_check
          %p152 = pneg %p79
        $region22: #{tpu_custom_call.1} parent=15 // pred_check_branch
          %154 = sbr.rel (%p152) target = $region24
        $region23: #{tpu_custom_call.1} parent=15 // pred_region
          %s155 = sand.u32 %s69, 1
          %s156 = scalar_lea.sflag [#allocation6], %s155
          %s157 = sand.u32 %s69, 1
          %s158 = smul.addr %s157, 2
          %s159 = scalar_lea.vmem [#allocation5], %s158
          %s160 = smul.u32 2, %s25
          %162 = vsyncadd %s156, 0
          %s163 = smul.addr %s24, 2
          %s164 = sadd.s32 %s160, %s163
          %s165 = scalar_lea.hbm %s1, %s164
          %s167 = sshll.u32 %s165, 4
          %s168 = int_to_ptr.hbm [resolvable:$true] %s167
          %s169 = sshll.u32 %s159, 4
          %s170 = int_to_ptr.vmem [resolvable:$true] %s169
          %172 = dma.hbm_to_vmem [thread:$0]  %s168, 32, %s170, %s156
        $region24: #{tpu_custom_call.1} parent=15 // pred_fallthru
          _
      $region16: #{tpu_custom_call.1} parent=5 // pred_fallthru
        _
      %p173 = scmp.le.s32.totalorder 1, %s17
      %p174 = scmp.lt.s32.totalorder %s17, 3
      %p175 = pnand %p173, %p174
      %p176 = pneg %p175
      // Predicated region
      $region25: #{tpu_custom_call.1} parent=5 // pred_check
        _
      $region26: #{tpu_custom_call.1} parent=5 // pred_check_branch
        %178 = sbr.rel (%p175) target = $region28
      $region27: #{tpu_custom_call.1} parent=5 // pred_region
        %s179 = ssub.s32 %s17, 1
        %s180 = sand.u32 %s44, 1
        %s181 = scalar_lea.sflag [#allocation3], %s180
        %s182 = sand.u32 %s44, 1
        %s183 = smul.addr %s182, 8
        %s184 = scalar_lea.vmem [#allocation2], %s183
        // Predicated region
        $region29: #{tpu_custom_call.1} parent=27 // pred_check
          %p185 = pneg %p57
        $region30: #{tpu_custom_call.1} parent=27 // pred_check_branch
          %187 = sbr.rel (%p185) target = $region32
        $region31: #{tpu_custom_call.1} parent=27 // pred_region
          %189 = dma.done %s181, 128
        $region32: #{tpu_custom_call.1} parent=27 // pred_fallthru
          _
        %s190 = sand.u32 %s72, 1
        %s191 = scalar_lea.sflag [#allocation6], %s190
        %s192 = sand.u32 %s72, 1
        %s193 = smul.addr %s192, 2
        %s194 = scalar_lea.vmem [#allocation5], %s193
        // Predicated region
        $region33: #{tpu_custom_call.1} parent=27 // pred_check
          %p195 = pneg %p85
        $region34: #{tpu_custom_call.1} parent=27 // pred_check_branch
          %197 = sbr.rel (%p195) target = $region36
        $region35: #{tpu_custom_call.1} parent=27 // pred_region
          %199 = dma.done %s191, 32
        $region36: #{tpu_custom_call.1} parent=27 // pred_fallthru
          _
        %s200 = sand.u32 %s44, 1
        %s201 = scalar_lea.sflag [#allocation3], %s200
        %s202 = sand.u32 %s44, 1
        %s203 = smul.addr %s202, 8
        %s204 = scalar_lea.vmem [#allocation2], %s203
        %p205 = pneg %p57
        %p206 = pneg %p54
        %s207 = sand.u32 %s72, 1
        %s208 = scalar_lea.sflag [#allocation6], %s207
        %s209 = sand.u32 %s72, 1
        %s210 = smul.addr %s209, 2
        %s211 = scalar_lea.vmem [#allocation5], %s210
        %p212 = pneg %p85
        %p213 = pneg %p82
        %p214 = pneg %p111
        %p215 = pneg %p108
        %s216 = sand.u32 %s98, 1
        %s217 = scalar_lea.sflag [#allocation4], %s216
        %s218 = sand.u32 %s98, 1
        %s219 = smul.addr %s218, 2
        %s220 = scalar_lea.vmem [#allocation7], %s219
        %s221 = smul.u32 2, %s27
        %s222 = smul.u32 2, %s27
        %p223 = scmp.eq.s32.totalorder %s27, 0
        // Predicated region
        $region37: #{tpu_custom_call.1} parent=27 // pred_check
          %p224 = pneg %p223
        $region38: #{tpu_custom_call.1} parent=27 // pred_check_branch
          %226 = sbr.rel (%p224) target = $region40
        $region39: #{tpu_custom_call.1} parent=27 // pred_region
          %v227 = vlaneseq
          %vm228 = vcmp.ge.s32.totalorder %v227, 0
          %vm229 = vcmp.lt.s32.totalorder %v227, 256
          %vm230 = vmand %vm228, %vm229
          %231 = vst.msk [vmem:[%s220] sm:$0x3] %vm230, 0.0
        $region40: #{tpu_custom_call.1} parent=27 // pred_fallthru
          _
        %v232 = vld [vmem:[%s184] sm:$0xff]
        %v233 = vld [vmem:[%s194] sm:$0x3]
        %v234 = vlaneseq
        %v235 = vshrl.u32 %v234, 7
        %v236 = vperm.slane %v233, 0
        %v237 = vperm.slane %v233, 1
        %vm238 = vcmp.eq.s32.totalorder %v235, %v236
        %vm239 = vcmp.eq.s32.totalorder %v235, %v237
        %241 = vst [vmem:[#allocation1] ss:$2 sm:$0xff] %v232
        %v242 = vld.sshfl [vmem:[#allocation1] sm:$0xff pattern:$0x75316420]
        %v243 = vld.sshfl [vmem:[#allocation1 + $0x8] sm:$0xff pattern:$0x75316420]
        %v246 = vsel %vm238, %v242, 0.0
        %v247 = vsel %vm239, %v243, 0.0
        %vm248 = vcmask 1043456
        %v249 = vsel %vm248, %v246, 0.0
        %v250 = vrot.slane %v249, 4
        %v251 = vadd.f32 %v249, %v250
        %v252 = vrot.slane %v251, 2
        %v253 = vadd.f32 %v251, %v252
        %v254 = vrot.slane %v253, 1
        %v255 = vadd.f32 %v253, %v254
        %v256 = vsel %vm248, %v247, 0.0
        %v257 = vrot.slane %v256, 4
        %v258 = vadd.f32 %v256, %v257
        %v259 = vrot.slane %v258, 2
        %v260 = vadd.f32 %v258, %v259
        %v261 = vrot.slane %v260, 1
        %v262 = vadd.f32 %v260, %v261
        %263 = vst [vmem:[#allocation1] ss:$2 sm:$0xff] %v232
        %v264 = vld.sshfl [vmem:[#allocation1] sm:$0xff pattern:$0x75316420]
        %v265 = vld.sshfl [vmem:[#allocation1 + $0x8] sm:$0xff pattern:$0x75316420]
        %v268 = vsel %vm248, %v264, -inf
        %v269 = vrot.slane %v268, 4
        %v270 = vmax.f32 %v268, %v269
        %v271 = vrot.slane %v270, 2
        %v272 = vmax.f32 %v270, %v271
        %v273 = vrot.slane %v272, 1
        %v274 = vmax.f32 %v272, %v273
        %v275 = vsel %vm248, %v265, -inf
        %v276 = vrot.slane %v275, 4
        %v277 = vmax.f32 %v275, %v276
        %v278 = vrot.slane %v277, 2
        %v279 = vmax.f32 %v277, %v278
        %v280 = vrot.slane %v279, 1
        %v281 = vmax.f32 %v279, %v280
        %v284 = vrot.slane %v281, 4
        %v285 = vsel %vm248, %v274, %v284
        %v287 = vsub.f32 %v232, %v285
        %v288 = vmul.f32 %v287, 1.442695
        %v289 = vpow.pop %v288
        %291 = vst [vmem:[#allocation1] ss:$2 sm:$0xff] %v289
        %v292 = vld.sshfl [vmem:[#allocation1] sm:$0xff pattern:$0x75316420]
        %v293 = vld.sshfl [vmem:[#allocation1 + $0x8] sm:$0xff pattern:$0x75316420]
        %v296 = vsel %vm248, %v292, 0.0
        %v297 = vrot.slane %v296, 4
        %v298 = vadd.f32 %v296, %v297
        %v299 = vrot.slane %v298, 2
        %v300 = vadd.f32 %v298, %v299
        %v301 = vrot.slane %v300, 1
        %v302 = vadd.f32 %v300, %v301
        %v303 = vsel %vm248, %v293, 0.0
        %v304 = vrot.slane %v303, 4
        %v305 = vadd.f32 %v303, %v304
        %v306 = vrot.slane %v305, 2
        %v307 = vadd.f32 %v305, %v306
        %v308 = vrot.slane %v307, 1
        %v309 = vadd.f32 %v307, %v308
        %v310 = vlog2.pop %v302
        %v311 = vmul.f32 %v310, 0.6931472
        %v312 = vlog2.pop %v309
        %v313 = vmul.f32 %v312, 0.6931472
        %v314 = vadd.f32 %v274, %v311
        %v315 = vadd.f32 %v281, %v313
        %v316 = vsub.f32 %v314, %v255
        %v317 = vsub.f32 %v315, %v262
        %v318 = vsub.f32 1.0, %v255
        %v319 = vsub.f32 1.0, %v262
        %v320 = vmul.f32 %v318, %v318
        %v321 = vmul.f32 %v319, %v319
        %v322 = vmul.f32 %v320, %v316
        %v323 = vmul.f32 %v321, %v317
        %v324 = vlaneseq
        %v325 = vand.u32 %v324, 127
        %v326 = vadd.s32 %v325, 128
        %s327 = smul.u32 %s27, 256
        %v328 = vstv %s327
        %v329 = vadd.s32 %v325, %v328
        %v330 = vadd.s32 %v326, %v328
        %vm331 = vcmp.lt.s32.totalorder %v329, 256
        %vm332 = vcmp.lt.s32.totalorder %v330, 256
        %v333 = vsel %vm331, %v322, 0.0
        %v334 = vsel %vm332, %v323, 0.0
        %v335 = vld [vmem:[%s220] sm:$0x3]
        %v338 = vrot.slane %v334, 7
        %vm339 = vcmask 1040384
        %v340 = vsel %vm339, %v333, %v338
        %v342 = vadd.f32 %v335, %v340
        %v343 = vlaneseq
        %vm344 = vcmp.ge.s32.totalorder %v343, 0
        %vm345 = vcmp.lt.s32.totalorder %v343, 256
        %vm346 = vmand %vm344, %vm345
        %347 = vst.msk [vmem:[%s220] sm:$0x3] %vm346, %v342
        %s348 = sand.u32 %s98, 1
        %s349 = scalar_lea.sflag [#allocation4], %s348
        %s350 = sand.u32 %s98, 1
        %s351 = smul.addr %s350, 2
        %s352 = scalar_lea.vmem [#allocation7], %s351
        // Predicated region
        $region41: #{tpu_custom_call.1} parent=27 // pred_check
          %p353 = pneg %p108
        $region42: #{tpu_custom_call.1} parent=27 // pred_check_branch
          %355 = sbr.rel (%p353) target = $region44
        $region43: #{tpu_custom_call.1} parent=27 // pred_region
          %357 = vsyncadd %s349, 0
          %s358 = smul.addr %s26, 2
          %s359 = scalar_lea.hbm %s2, %s358
          %s361 = sshll.u32 %s352, 4
          %s362 = int_to_ptr.vmem [resolvable:$true] %s361
          %s363 = sshll.u32 %s359, 4
          %s364 = int_to_ptr.hbm [resolvable:$true] %s363
          %366 = dma.vmem_to_hbm [thread:$0]  %s362, 32, %s364, %s349
        $region44: #{tpu_custom_call.1} parent=27 // pred_fallthru
          _
      $region28: #{tpu_custom_call.1} parent=5 // pred_fallthru
        _
      %p367 = scmp.le.s32.totalorder 2, %s17
      // Predicated region
      $region45: #{tpu_custom_call.1} parent=5 // pred_check
        %p368 = pneg %p367
      $region46: #{tpu_custom_call.1} parent=5 // pred_check_branch
        %370 = sbr.rel (%p368) target = $region48
      $region47: #{tpu_custom_call.1} parent=5 // pred_region
        %s371 = ssub.s32 %s17, 2
        // Predicated region
        $region49: #{tpu_custom_call.1} parent=47 // pred_check
          %p372 = pneg %p114
        $region50: #{tpu_custom_call.1} parent=47 // pred_check_branch
          %374 = sbr.rel (%p372) target = $region52
        $region51: #{tpu_custom_call.1} parent=47 // pred_region
          %s375 = sand.u32 %s99, 1
          %s376 = scalar_lea.sflag [#allocation4], %s375
          %s377 = sand.u32 %s99, 1
          %s378 = smul.addr %s377, 2
          %s379 = scalar_lea.vmem [#allocation7], %s378
          %381 = dma.done %s376, 32
        $region52: #{tpu_custom_call.1} parent=47 // pred_fallthru
          _
      $region48: #{tpu_custom_call.1} parent=5 // pred_fallthru
        _
    $region6: #{tpu_custom_call.1} parent=1 // loop_footer
      %s21 = sadd.s32 1, %s17
    $region7: #{tpu_custom_call.1} parent=1 // loop_footer_branch
      %16 = sbr.rel target = $region3
    $region8: #{tpu_custom_call.1} parent=1 // loop_exit
      _
    %382 = vsyncpa [#allocation3], 1
    %s383 = scalar_lea.sflag [#allocation3], 1
    %384 = vsyncpa %s383, 1
    %385 = vsyncpa [#allocation6], 1
    %s386 = scalar_lea.sflag [#allocation6], 1
    %387 = vsyncpa %s386, 1
    %388 = vsyncpa [#allocation4], 1
    %s389 = scalar_lea.sflag [#allocation4], 1
    %390 = vsyncpa %s389, 1

</llo_original>
